<compile_context>
chip_gen: v6e
topology: v6e:2x2x1
jax: 0.10.0
libtpu: 0.0.40
codegen_flags: <defaults>
</compile_context>

<pallas_src>
import jax
import jax.numpy as jnp
from jax.experimental import pallas as pl
from jax.experimental.pallas import tpu as pltpu


def _round_up(x, m):
    return ((x + m - 1) // m) * m


def _pick_seq_tile(T, cap=256):
    """Sequence tile: full T if small, else the largest multiple-of-8 divisor <= cap."""
    if T <= cap:
        return T
    for t in range(cap, 7, -8):
        if T % t == 0:
            return t
    return T  # fall back to an untiled sequence axis


def _vmem_config():
    """(vmem_limit_bytes, working budget) per TPU generation."""
    kind = ""
    try:
        kind = jax.devices()[0].device_kind.lower()
    except Exception:
        pass
    if "v7" in kind:                       # 64 MiB physical VMEM -> leave headroom
        return 48 * 1024 * 1024, 20 * 1024 * 1024
    return 96 * 1024 * 1024, 40 * 1024 * 1024  # v5e / v6e: 128 MiB physical


def _pick_batch_block(B, Tq, Tk, C, Hp, in_itemsize, budget_bytes):
    """Largest divisor of B whose per-step working set fits the VMEM budget.
    f32 temporaries are counted at 4 bytes regardless of the input dtype."""
    f32 = 4
    per_row = (
        2 * (Tq + Tk) * C * in_itemsize       # x_q / x_kv blocks (double-buffered)
        + 2 * Tq * Hp * in_itemsize           # output block (double-buffered)
        + Tq * Hp * in_itemsize               # q scratch
        + Tq * (Hp + 2) * f32                 # acc + m + l scratch (f32)
        + 2 * Tq * Tk * f32                   # s and p temporaries (f32)
        + Tk * 2 * Hp * (f32 + in_itemsize)   # kv projection (f32) + k/v casts
    )
    bt = int(max(1, min(B, budget_bytes // max(per_row, 1))))
    while B % bt:
        bt -= 1
    return bt


def make_attention_head(head_size, embedding_dim, context_length, dropout=0.0):
    """Returns (params_init_fn, apply_fn) mirroring the PyTorch AttentionHead."""
    H = head_size
    Hp = _round_up(H, 128)          # 128-lane-aligned head segment (q/k/v slices + output)
    scale = float(H) ** (-0.5)

    def kernel(xq_ref, xkv_ref, w_ref, o_ref, q_scr, m_scr, l_scr, acc_scr):
        # xq_ref : (Bt, Tq, C)   activations for this (batch-block, q-tile)
        # xkv_ref: (Bt, Tk, C)   activations for this kv-tile
        # w_ref  : (C, 3*Hp)     packed [Wq*scale | pad | Wk | pad | Wv | pad]
        # o_ref  : (Bt, Tq, Hp)  lane-dense (128-padded) output tile
        Bt, Tq, C = xq_ref.shape
        Tk = xkv_ref.shape[1]
        cdt = xq_ref.dtype                      # MXU input dtype (bf16 stays bf16)
        qi = pl.program_id(1)
        ki = pl.program_id(2)
        nk = pl.num_programs(2)
        q_start = qi * Tq
        k_start = ki * Tk

        @pl.when(ki == 0)
        def _init():
            # Project Q once per (batch-block, q-tile); 1/sqrt(H) already in Wq.
            q = jnp.einsum("btc,ch->bth", xq_ref[...], w_ref[:, :Hp],
                           preferred_element_type=jnp.float32)
            q_scr[...] = q.astype(cdt)
            m_scr[...] = jnp.full(m_scr.shape, -1e30, m_scr.dtype)
            l_scr[...] = jnp.zeros(l_scr.shape, l_scr.dtype)
            acc_scr[...] = jnp.zeros(acc_scr.shape, acc_scr.dtype)

        # Causal block skip: kv blocks strictly in the future of every q row do nothing.
        @pl.when(k_start <= q_start + Tq - 1)
        def _compute():
            # Fused K|V projection for this kv tile (one wide MXU matmul).
            kv = jnp.einsum("btc,ch->bth", xkv_ref[...], w_ref[:, Hp:],
                            preferred_element_type=jnp.float32)        # (Bt, Tk, 2*Hp)
            k = kv[:, :, :Hp].astype(cdt)                               # lane-aligned slices
            v = kv[:, :, Hp:].astype(cdt)

            # Q @ K^T, contracting the head dims directly (no explicit transpose).
            s = jnp.einsum("bqh,bkh->bqk", q_scr[...], k,
                           preferred_element_type=jnp.float32)          # (Bt, Tq, Tk) f32

            # In-kernel causal mask (no tril DMA); large finite negative, never NaN.
            row = q_start + jax.lax.broadcasted_iota(jnp.int32, (Tq, Tk), 0)
            col = k_start + jax.lax.broadcasted_iota(jnp.int32, (Tq, Tk), 1)
            s = jnp.where((row >= col)[None, :, :], s, -1e30)

            # Online softmax (unnormalized); normalization deferred to the epilogue.
            m_prev = m_scr[...]
            m_new = jnp.maximum(m_prev, jnp.max(s, axis=-1, keepdims=True))
            alpha = jnp.exp(m_prev - m_new)
            p = jnp.exp(s - m_new)
            l_scr[...] = alpha * l_scr[...] + jnp.sum(p, axis=-1, keepdims=True)
            acc_scr[...] = alpha * acc_scr[...] + jnp.einsum(
                "bqk,bkh->bqh", p.astype(cdt), v,
                preferred_element_type=jnp.float32)
            m_scr[...] = m_new

        # TODO(synk): nn.Dropout is identity in eval mode / p=0; stochastic training
        # dropout would need pltpu.prng_seed + pltpu.prng_random_bits on p.

        @pl.when(ki == nk - 1)
        def _finalize():
            inv_l = pl.reciprocal(l_scr[...], approx=True)   # EUP slot; (Bt,Tq,1) only
            o_ref[...] = (acc_scr[...] * inv_l).astype(o_ref.dtype)

    def init_params(key):
        kk, kq, kv = jax.random.split(key, 3)
        # nn.Linear default init: U(-1/sqrt(fan_in), 1/sqrt(fan_in)), fan_in = C
        bound = 1.0 / (embedding_dim ** 0.5)
        wk = jax.random.uniform(kk, (embedding_dim, H), jnp.float32, -bound, bound)
        wq = jax.random.uniform(kq, (embedding_dim, H), jnp.float32, -bound, bound)
        wv = jax.random.uniform(kv, (embedding_dim, H), jnp.float32, -bound, bound)
        return {"wk": wk, "wq": wq, "wv": wv}

    def apply(params, x):
        B, T, C = x.shape
        assert C == embedding_dim and T <= context_length

        # Pack [Wq*scale | Wk | Wv] into (C, 3*Hp), each segment 128-lane aligned and
        # zero-padded (padded q/k columns contribute 0 to scores, padded v columns
        # produce 0 output columns that the wrapper slices away).
        w = jnp.zeros((C, 3 * Hp), x.dtype)
        w = w.at[:, 0:H].set((params["wq"] * scale).astype(x.dtype))
        w = w.at[:, Hp:Hp + H].set(params["wk"].astype(x.dtype))
        w = w.at[:, 2 * Hp:2 * Hp + H].set(params["wv"].astype(x.dtype))

        Tq = Tk = _pick_seq_tile(T)
        nq, nk = T // Tq, T // Tk

        vmem_limit, vmem_budget = _vmem_config()
        w_bytes = 2 * C * 3 * Hp * x.dtype.itemsize          # double-buffered weight
        Bt = _pick_batch_block(B, Tq, Tk, C, Hp, x.dtype.itemsize,
                               max(vmem_budget - w_bytes, 1 << 20))
        # Keep >= 2 grid steps along a "parallel" axis so v7x's two TensorCores both
        # get work and the pipeline has DMA/compute to overlap.
        if B >= 2 and (B // Bt) * nq < 2:
            Bt = max(1, B // 2)
        while B % Bt:
            Bt -= 1

        grid = (B // Bt, nq, nk)

        out_padded = pl.pallas_call(
            kernel,
            out_shape=jax.ShapeDtypeStruct((B, T, Hp), x.dtype),
            grid_spec=pltpu.PrefetchScalarGridSpec(
                num_scalar_prefetch=0,
                grid=grid,
                in_specs=[
                    pl.BlockSpec((Bt, Tq, C), lambda b, qi, ki: (b, qi, 0)),  # x for Q
                    pl.BlockSpec((Bt, Tk, C), lambda b, qi, ki: (b, ki, 0)),  # x for K/V
                    pl.BlockSpec((C, 3 * Hp), lambda b, qi, ki: (0, 0)),      # fused W
                ],
                out_specs=pl.BlockSpec((Bt, Tq, Hp), lambda b, qi, ki: (b, qi, 0)),
                scratch_shapes=[
                    pltpu.VMEM((Bt, Tq, Hp), x.dtype),      # q (pre-scaled)
                    pltpu.VMEM((Bt, Tq, 1), jnp.float32),   # running max m
                    pltpu.VMEM((Bt, Tq, 1), jnp.float32),   # running denominator l
                    pltpu.VMEM((Bt, Tq, Hp), jnp.float32),  # output accumulator
                ],
            ),
            compiler_params=pltpu.CompilerParams(
                dimension_semantics=("parallel", "parallel", "arbitrary"),
                vmem_limit_bytes=vmem_limit,
            ),
        )(x, x, w)

        # Wrapper-side slice keeps the in-kernel stores lane-dense (unmasked vst).
        return out_padded[:, :, :H]

    return init_params, apply


def reference(params, x):
    """Pure-JAX reference matching the PyTorch forward (eval mode)."""
    k = x @ params["wk"]
    q = x @ params["wq"]
    v = x @ params["wv"]
    T = x.shape[1]
    s = (q @ jnp.swapaxes(k, -2, -1)) * (k.shape[-1] ** -0.5)
    causal = jnp.tril(jnp.ones((T, T), dtype=bool))
    s = jnp.where(causal, s, -jnp.inf)
    p = jax.nn.softmax(s, axis=-1)
    return p @ v


if __name__ == "__main__":
    # Small shapes consistent with the module's forward:
    #   batch=2, seq(tokens)=8, embedding=32, head_size=16, context_length=8
    B, T, C, H = 2, 8, 32, 16
    context_length = 8
    dropout = 0.0

    init_params, apply = make_attention_head(
        head_size=H, embedding_dim=C, context_length=context_length, dropout=dropout)

    key = jax.random.PRNGKey(0)
    pkey, xkey = jax.random.split(key)
    params = init_params(pkey)
    x = jax.random.normal(xkey, (B, T, C), dtype=jnp.float32)

    out = apply(params, x)
    out = jax.block_until_ready(out)

    ref = reference(params, x)
    assert out.shape == (B, T, H), out.shape
    # Tolerance accounts for pl.reciprocal(approx=True) in the output normalization.
    assert jnp.allclose(out, ref, atol=5e-3, rtol=5e-3), \
        f"max err {jnp.max(jnp.abs(out - ref))}"

    print("KERNEL_OK")
</pallas_src>

<mosaic_0001>
module attributes {stable_mosaic.version = 11 : i64} {
  func.func @kernel(%arg0: i32, %arg1: i32, %arg2: i32, %arg3: memref<1x8x32xf32, #tpu.memory_space<vmem>>, %arg4: memref<1x8x32xf32, #tpu.memory_space<vmem>>, %arg5: memref<32x384xf32, #tpu.memory_space<vmem>>, %arg6: memref<1x8x128xf32, #tpu.memory_space<vmem>>, %arg7: memref<1x8x128xf32, #tpu.memory_space<vmem>>, %arg8: memref<1x8x1xf32, #tpu.memory_space<vmem>>, %arg9: memref<1x8x1xf32, #tpu.memory_space<vmem>>, %arg10: memref<1x8x128xf32, #tpu.memory_space<vmem>>) attributes {dimension_semantics = [#tpu.dimension_semantics<parallel>, #tpu.dimension_semantics<parallel>, #tpu.dimension_semantics<arbitrary>], iteration_bounds = array<i64: 2, 1, 1>, scalar_prefetch = 0 : i64, scratch_operands = 4 : i64, tpu.core_type = #tpu.core_type<tc>, window_params = [{transform_indices = @transform_0, window_bounds = array<i64: 1, 8, 32>}, {transform_indices = @transform_1, window_bounds = array<i64: 1, 8, 32>}, {pipeline_mode = #tpu.pipeline_mode<synchronous>, transform_indices = @transform_2, window_bounds = array<i64: 32, 384>}, {transform_indices = @transform_3, window_bounds = array<i64: 1, 8, 128>}]} {
    %c8_i32 = arith.constant 8 : i32
    %0 = arith.muli %arg1, %c8_i32 : i32
    %c8_i32_0 = arith.constant 8 : i32
    %1 = arith.muli %arg2, %c8_i32_0 : i32
    %c0_i32 = arith.constant 0 : i32
    %2 = arith.cmpi eq, %arg2, %c0_i32 : i32
    %3 = arith.extui %2 : i1 to i32
    %c0_i32_1 = arith.constant 0 : i32
    %4 = arith.cmpi ne, %3, %c0_i32_1 : i32
    scf.if %4 {
      %c0 = arith.constant 0 : index
      %c0_6 = arith.constant 0 : index
      %c0_7 = arith.constant 0 : index
      %13 = vector.load %arg3[%c0, %c0_6, %c0_7] : memref<1x8x32xf32, #tpu.memory_space<vmem>>, vector<1x8x32xf32>
      %c0_8 = arith.constant 0 : index
      %c0_9 = arith.constant 0 : index
      %14 = vector.load %arg5[%c0_8, %c0_9] : memref<32x384xf32, #tpu.memory_space<vmem>>, vector<32x128xf32>
      "tpu.trace_start"() <{level = 10 : i32, message = "btc,ch->bth"}> : () -> ()
      %cst = arith.constant dense<0.000000e+00> : vector<1x8x128xf32>
      %15 = tpu.matmul %13, %14, %cst {dimension_numbers = #tpu.dot_dimension_numbers<[2], [0], [0, 1], [1], [0, 0, 0, 1, 1, 1], [], []>} : vector<1x8x32xf32>, vector<32x128xf32>, vector<1x8x128xf32> -> vector<1x8x128xf32>
      "tpu.trace_stop"() : () -> ()
      %c0_10 = arith.constant 0 : index
      %c0_11 = arith.constant 0 : index
      %c0_12 = arith.constant 0 : index
      %16 = vector.load %arg7[%c0_10, %c0_11, %c0_12] : memref<1x8x128xf32, #tpu.memory_space<vmem>>, vector<1x8x128xf32>
      tpu.vector_store %arg7[%c0_10, %c0_11, %c0_12], %15 {strides = array<i32>} : memref<1x8x128xf32, #tpu.memory_space<vmem>>, vector<1x8x128xf32>,
      %cst_13 = arith.constant -1.000000e+30 : f32
      %17 = vector.broadcast %cst_13 : f32 to vector<1x8x1xf32>
      %c0_14 = arith.constant 0 : index
      %c0_15 = arith.constant 0 : index
      %c0_16 = arith.constant 0 : index
      %18 = vector.load %arg8[%c0_14, %c0_15, %c0_16] : memref<1x8x1xf32, #tpu.memory_space<vmem>>, vector<1x8x1xf32>
      tpu.vector_store %arg8[%c0_14, %c0_15, %c0_16], %17 {strides = array<i32>} : memref<1x8x1xf32, #tpu.memory_space<vmem>>, vector<1x8x1xf32>,
      %cst_17 = arith.constant 0.000000e+00 : f32
      %19 = vector.broadcast %cst_17 : f32 to vector<1x8x1xf32>
      %c0_18 = arith.constant 0 : index
      %c0_19 = arith.constant 0 : index
      %c0_20 = arith.constant 0 : index
      %20 = vector.load %arg9[%c0_18, %c0_19, %c0_20] : memref<1x8x1xf32, #tpu.memory_space<vmem>>, vector<1x8x1xf32>
      tpu.vector_store %arg9[%c0_18, %c0_19, %c0_20], %19 {strides = array<i32>} : memref<1x8x1xf32, #tpu.memory_space<vmem>>, vector<1x8x1xf32>,
      %cst_21 = arith.constant 0.000000e+00 : f32
      %21 = vector.broadcast %cst_21 : f32 to vector<1x8x128xf32>
      %c0_22 = arith.constant 0 : index
      %c0_23 = arith.constant 0 : index
      %c0_24 = arith.constant 0 : index
      %22 = vector.load %arg10[%c0_22, %c0_23, %c0_24] : memref<1x8x128xf32, #tpu.memory_space<vmem>>, vector<1x8x128xf32>
      tpu.vector_store %arg10[%c0_22, %c0_23, %c0_24], %21 {strides = array<i32>} : memref<1x8x128xf32, #tpu.memory_space<vmem>>, vector<1x8x128xf32>,
    } else {
    }
    %c8_i32_2 = arith.constant 8 : i32
    %5 = arith.addi %0, %c8_i32_2 : i32
    %c1_i32 = arith.constant 1 : i32
    %6 = arith.subi %5, %c1_i32 : i32
    %7 = arith.cmpi sle, %1, %6 : i32
    %8 = arith.extui %7 : i1 to i32
    %c0_i32_3 = arith.constant 0 : i32
    %9 = arith.cmpi ne, %8, %c0_i32_3 : i32
    scf.if %9 {
      %c0 = arith.constant 0 : index
      %c0_6 = arith.constant 0 : index
      %c0_7 = arith.constant 0 : index
      %13 = vector.load %arg4[%c0, %c0_6, %c0_7] : memref<1x8x32xf32, #tpu.memory_space<vmem>>, vector<1x8x32xf32>
      %c0_8 = arith.constant 0 : index
      %c128 = arith.constant 128 : index
      %14 = vector.load %arg5[%c0_8, %c128] : memref<32x384xf32, #tpu.memory_space<vmem>>, vector<32x256xf32>
      "tpu.trace_start"() <{level = 10 : i32, message = "btc,ch->bth"}> : () -> ()
      %cst = arith.constant dense<0.000000e+00> : vector<1x8x256xf32>
      %15 = tpu.matmul %13, %14, %cst {dimension_numbers = #tpu.dot_dimension_numbers<[2], [0], [0, 1], [1], [0, 0, 0, 1, 1, 1], [], []>} : vector<1x8x32xf32>, vector<32x256xf32>, vector<1x8x256xf32> -> vector<1x8x256xf32>
      "tpu.trace_stop"() : () -> ()
      %16 = vector.extract_strided_slice %15 {offsets = [0, 0, 0], sizes = [1, 8, 128], strides = [1, 1, 1]} : vector<1x8x256xf32> to vector<1x8x128xf32>
      %17 = vector.extract_strided_slice %15 {offsets = [0, 0, 128], sizes = [1, 8, 128], strides = [1, 1, 1]} : vector<1x8x256xf32> to vector<1x8x128xf32>
      %c0_9 = arith.constant 0 : index
      %c0_10 = arith.constant 0 : index
      %c0_11 = arith.constant 0 : index
      %18 = vector.load %arg7[%c0_9, %c0_10, %c0_11] : memref<1x8x128xf32, #tpu.memory_space<vmem>>, vector<1x8x128xf32>
      "tpu.trace_start"() <{level = 10 : i32, message = "bqh,bkh->bqk"}> : () -> ()
      %cst_12 = arith.constant dense<0.000000e+00> : vector<1x8x8xf32>
      %19 = tpu.matmul %18, %16, %cst_12 {dimension_numbers = #tpu.dot_dimension_numbers<[2], [2], [1], [1], [0, 0, 0, 1, 1, 1], [0], [0]>} : vector<1x8x128xf32>, vector<1x8x128xf32>, vector<1x8x8xf32> -> vector<1x8x8xf32>
      "tpu.trace_stop"() : () -> ()
      %20 = tpu.iota {dimensions = array<i32: 0>} : vector<8x8xi32>
      %21 = vector.broadcast %0 : i32 to vector<8x8xi32>
      %22 = arith.addi %21, %20 : vector<8x8xi32>
      %23 = tpu.iota {dimensions = array<i32: 1>} : vector<8x8xi32>
      %24 = vector.broadcast %1 : i32 to vector<8x8xi32>
      %25 = arith.addi %24, %23 : vector<8x8xi32>
      %26 = arith.cmpi sge, %22, %25 : vector<8x8xi32>
      %27 = vector.shape_cast %26 : vector<8x8xi1> to vector<1x8x8xi1>
      %cst_13 = arith.constant -1.000000e+30 : f32
      %28 = vector.broadcast %cst_13 : f32 to vector<1x8x8xf32>
      %29 = arith.select %27, %19, %28 : vector<1x8x8xi1>, vector<1x8x8xf32>
      %c0_14 = arith.constant 0 : index
      %c0_15 = arith.constant 0 : index
      %c0_16 = arith.constant 0 : index
      %30 = vector.load %arg8[%c0_14, %c0_15, %c0_16] : memref<1x8x1xf32, #tpu.memory_space<vmem>>, vector<1x8x1xf32>
      %cst_17 = arith.constant dense<0xFF800000> : vector<1x8xf32>
      %31 = vector.multi_reduction <maximumf>, %29, %cst_17 [2] : vector<1x8x8xf32> to vector<1x8xf32>
      %32 = vector.shape_cast %31 : vector<1x8xf32> to vector<1x8x1xf32>
      %33 = arith.maximumf %30, %32 : vector<1x8x1xf32>
      %34 = arith.subf %30, %33 : vector<1x8x1xf32>
      %35 = math.exp %34 : vector<1x8x1xf32>
      %36 = vector.broadcast %33 : vector<1x8x1xf32> to vector<1x8x8xf32>
      %37 = arith.subf %29, %36 : vector<1x8x8xf32>
      %38 = math.exp %37 : vector<1x8x8xf32>
      %c0_18 = arith.constant 0 : index
      %c0_19 = arith.constant 0 : index
      %c0_20 = arith.constant 0 : index
      %39 = vector.load %arg9[%c0_18, %c0_19, %c0_20] : memref<1x8x1xf32, #tpu.memory_space<vmem>>, vector<1x8x1xf32>
      %40 = arith.mulf %35, %39 : vector<1x8x1xf32>
      %cst_21 = arith.constant dense<0.000000e+00> : vector<1x8xf32>
      %41 = vector.multi_reduction <add>, %38, %cst_21 [2] : vector<1x8x8xf32> to vector<1x8xf32>
      %42 = vector.shape_cast %41 : vector<1x8xf32> to vector<1x8x1xf32>
      %43 = arith.addf %40, %42 : vector<1x8x1xf32>
      %c0_22 = arith.constant 0 : index
      %c0_23 = arith.constant 0 : index
      %c0_24 = arith.constant 0 : index
      %44 = vector.load %arg9[%c0_22, %c0_23, %c0_24] : memref<1x8x1xf32, #tpu.memory_space<vmem>>, vector<1x8x1xf32>
      tpu.vector_store %arg9[%c0_22, %c0_23, %c0_24], %43 {strides = array<i32>} : memref<1x8x1xf32, #tpu.memory_space<vmem>>, vector<1x8x1xf32>,
      %c0_25 = arith.constant 0 : index
      %c0_26 = arith.constant 0 : index
      %c0_27 = arith.constant 0 : index
      %45 = vector.load %arg10[%c0_25, %c0_26, %c0_27] : memref<1x8x128xf32, #tpu.memory_space<vmem>>, vector<1x8x128xf32>
      %46 = vector.broadcast %35 : vector<1x8x1xf32> to vector<1x8x128xf32>
      %47 = arith.mulf %46, %45 : vector<1x8x128xf32>
      "tpu.trace_start"() <{level = 10 : i32, message = "bqk,bkh->bqh"}> : () -> ()
      %cst_28 = arith.constant dense<0.000000e+00> : vector<1x8x128xf32>
      %48 = tpu.matmul %38, %17, %cst_28 {dimension_numbers = #tpu.dot_dimension_numbers<[2], [1], [1], [2], [0, 0, 0, 1, 1, 2], [0], [0]>} : vector<1x8x8xf32>, vector<1x8x128xf32>, vector<1x8x128xf32> -> vector<1x8x128xf32>
      "tpu.trace_stop"() : () -> ()
      %49 = arith.addf %47, %48 : vector<1x8x128xf32>
      %c0_29 = arith.constant 0 : index
      %c0_30 = arith.constant 0 : index
      %c0_31 = arith.constant 0 : index
      %50 = vector.load %arg10[%c0_29, %c0_30, %c0_31] : memref<1x8x128xf32, #tpu.memory_space<vmem>>, vector<1x8x128xf32>
      tpu.vector_store %arg10[%c0_29, %c0_30, %c0_31], %49 {strides = array<i32>} : memref<1x8x128xf32, #tpu.memory_space<vmem>>, vector<1x8x128xf32>,
      %c0_32 = arith.constant 0 : index
      %c0_33 = arith.constant 0 : index
      %c0_34 = arith.constant 0 : index
      %51 = vector.load %arg8[%c0_32, %c0_33, %c0_34] : memref<1x8x1xf32, #tpu.memory_space<vmem>>, vector<1x8x1xf32>
      tpu.vector_store %arg8[%c0_32, %c0_33, %c0_34], %33 {strides = array<i32>} : memref<1x8x1xf32, #tpu.memory_space<vmem>>, vector<1x8x1xf32>,
    } else {
    }
    %c0_i32_4 = arith.constant 0 : i32
    %10 = arith.cmpi eq, %arg2, %c0_i32_4 : i32
    %11 = arith.extui %10 : i1 to i32
    %c0_i32_5 = arith.constant 0 : i32
    %12 = arith.cmpi ne, %11, %c0_i32_5 : i32
    scf.if %12 {
      %c0 = arith.constant 0 : index
      %c0_6 = arith.constant 0 : index
      %c0_7 = arith.constant 0 : index
      %13 = vector.load %arg9[%c0, %c0_6, %c0_7] : memref<1x8x1xf32, #tpu.memory_space<vmem>>, vector<1x8x1xf32>
      %14 = tpu.reciprocal %13 {approx = true} : vector<1x8x1xf32> -> vector<1x8x1xf32>
      %c0_8 = arith.constant 0 : index
      %c0_9 = arith.constant 0 : index
      %c0_10 = arith.constant 0 : index
      %15 = vector.load %arg10[%c0_8, %c0_9, %c0_10] : memref<1x8x128xf32, #tpu.memory_space<vmem>>, vector<1x8x128xf32>
      %16 = vector.broadcast %14 : vector<1x8x1xf32> to vector<1x8x128xf32>
      %17 = arith.mulf %15, %16 : vector<1x8x128xf32>
      %c0_11 = arith.constant 0 : index
      %c0_12 = arith.constant 0 : index
      %c0_13 = arith.constant 0 : index
      %18 = vector.load %arg6[%c0_11, %c0_12, %c0_13] : memref<1x8x128xf32, #tpu.memory_space<vmem>>, vector<1x8x128xf32>
      tpu.vector_store %arg6[%c0_11, %c0_12, %c0_13], %17 {strides = array<i32>} : memref<1x8x128xf32, #tpu.memory_space<vmem>>, vector<1x8x128xf32>,
    } else {
    }
    return
  }
  func.func @transform_0(%arg0: i32, %arg1: i32, %arg2: i32) -> (i32, i32, i32) {
    %c0_i32 = arith.constant 0 : i32
    %c0_i32_0 = arith.constant 0 : i32
    return %arg0, %arg1, %c0_i32 : i32, i32, i32
  }
  func.func @transform_1(%arg0: i32, %arg1: i32, %arg2: i32) -> (i32, i32, i32) {
    %c0_i32 = arith.constant 0 : i32
    %c0_i32_0 = arith.constant 0 : i32
    return %arg0, %arg2, %c0_i32 : i32, i32, i32
  }
  func.func @transform_2(%arg0: i32, %arg1: i32, %arg2: i32) -> (i32, i32) {
    %c0_i32 = arith.constant 0 : i32
    %c0_i32_0 = arith.constant 0 : i32
    %c0_i32_1 = arith.constant 0 : i32
    return %c0_i32, %c0_i32_0 : i32, i32
  }
  func.func @transform_3(%arg0: i32, %arg1: i32, %arg2: i32) -> (i32, i32, i32) {
    %c0_i32 = arith.constant 0 : i32
    %c0_i32_0 = arith.constant 0 : i32
    return %arg0, %arg1, %c0_i32 : i32, i32, i32
  }
}

</mosaic_0001>

<llo_original>
// kernel: tpu_custom_call.1
$region0: #{tpu_custom_call.1}
  #allocation0 [shape = 'u32[]', space=smem, size = 0x4, offset = 0x4, fixed_abs, tag = 'smem constant byte address 0x4 - core index']
  #allocation1 [shape = 'u32[144,128]{1,0:T(1,128)}', space=vmem, size = 0x12000, scoped, tag = 'internal scratch']
  #allocation2 [shape = 'f32[1,8,128]{2,1,0:T(8,128)}', space=vmem, size = 0x1000, scoped, tag = 'scratch operand']
  #allocation3 [shape = 'f32[1,8,1]{2,1,0:T(8,128)}', space=vmem, size = 0x1000, scoped, tag = 'scratch operand']
  #allocation4 [shape = 'f32[1,8,1]{2,1,0:T(8,128)}', space=vmem, size = 0x1000, scoped, tag = 'scratch operand']
  #allocation5 [shape = 'f32[1,8,128]{2,1,0:T(8,128)}', space=vmem, size = 0x1000, scoped, tag = 'scratch operand']
  %s0 = inlined_call_operand.hbm [shape: f32[2,8,32], index: 0, kind: input, shape index: {}]
  %s1 = inlined_call_operand.hbm [shape: f32[2,8,32], index: 1, kind: input, shape index: {}]
  %s2 = inlined_call_operand.hbm [shape: f32[32,384], index: 2, kind: input, shape index: {}]
  %s3 = inlined_call_operand.hbm [shape: f32[2,8,128], index: 3, kind: output, shape index: {}]
  %s4 = sld [smem:[#allocation0]]
  $region69: #{tpu_custom_call.1} parent=0
    _
  %s6 = ssub.s32 1, %s4
  %s7 = scalar_select 0, %s6, %s4
  $region1: #{tpu_custom_call.1} parent=0
    #allocation6 [shape = 'u8[8192]{0}', space=vmem, size = 0x2000, scoped, tag = 'input window, operand 0']
    #allocation7 [shape = 's32[2]{0}', space=sflag, size = 0x8, scoped, tag = 'scoped memory for tpu_custom_call.1']
    #allocation8 [shape = 's32[2]{0}', space=sflag, size = 0x8, scoped, tag = 'scoped memory for tpu_custom_call.1']
    #allocation9 [shape = 'u8[8192]{0}', space=vmem, size = 0x2000, scoped, tag = 'input window, operand 1']
    #allocation10 [shape = 's32[2]{0}', space=sflag, size = 0x8, scoped, tag = 'scoped memory for tpu_custom_call.1']
    #allocation11 [shape = 'u8[49152]{0}', space=vmem, size = 0xc000, scoped, tag = 'input window, operand 2, single buffered']
    #allocation12 [shape = 'u8[8192]{0}', space=vmem, size = 0x2000, scoped, tag = 'output window, operand 0']
    %8 = vsyncpa [#allocation7], 0
    %s9 = scalar_lea.sflag [#allocation7], 1
    %10 = vsyncpa %s9, 0
    %11 = vsyncpa [#allocation10], 0
    %s12 = scalar_lea.sflag [#allocation10], 1
    %13 = vsyncpa %s12, 0
    %14 = vsyncpa [#allocation8], 0
    %s15 = scalar_lea.sflag [#allocation8], 1
    %16 = vsyncpa %s15, 0
    loop: start=0, step=1, limit=4
    $region2: #{tpu_custom_call.1} parent=1 // loop_pre_header
      _
    $region3: #{tpu_custom_call.1} parent=1 // loop_header
      %s18 = sphi 0, %s22
      %p19 = scmp.ge.s32.totalorder %s18, 4
      %s25 = sphi 0, %s44
      %s26 = sphi 0, %s40
      %s27 = sphi 0, %s36
      %s28 = sphi 0, %s25
      %s29 = sphi 0, %s26
      %s30 = sphi 0, %s27
      %s31 = sphi 0, %s28
      %s32 = sphi 0, %s29
      %s33 = sphi 0, %s30
      %s49 = sphi 0, %s51
      %s52 = sphi 0, %s49
      %s53 = sphi 0, %s52
      %s69 = sphi 0, %s53
      %s77 = sphi 0, %s79
      %s80 = sphi 0, %s77
      %s81 = sphi 0, %s80
      %s97 = sphi 0, %s81
      %s101 = sphi 0, %s101
      %s103 = sphi 0, %s101
      %s104 = sphi 0, %s103
      %s118 = sphi 0, %s104
      %s126 = sphi 0, %s128
      %s129 = sphi 0, %s126
      %s130 = sphi 0, %s129
      %s146 = sphi 0, %s130
    $region4: #{tpu_custom_call.1} parent=1 // loop_header_branch
      %21 = sbr.rel (%p19) target = $region8
    $region5: #{tpu_custom_call.1} parent=1 // loop_body
      %s23 = ssub.s32 %s18, 1
      %s24 = ssub.s32 %s18, 2
      %s34 = sadd.s32 1, %s27
      %p35 = scmp.ge.s32.totalorder %s34, 1
      %s36 = scalar_select %p35, 0, %s34
      %s37 = sadd.s32 1, %s26
      %s38 = scalar_select %p35, %s37, %s26
      %p39 = scmp.ge.s32.totalorder %s38, 1
      %s40 = scalar_select %p39, 0, %s38
      %s41 = sadd.s32 1, %s25
      %s42 = scalar_select %p39, %s41, %s25
      %p43 = scmp.ge.s32.totalorder %s42, 2
      %s44 = scalar_select %p43, 0, %s42
      %s45 = ssub.s32 %s25, %s44
      %s46 = ssub.s32 %s26, %s40
      %s47 = sor.u32 %s45, %s46
      %p48 = scmp.eq.s32.totalorder %s47, 0
      %s50 = sadd.s32 %s49, 1
      %s51 = scalar_select %p48, %s49, %s50
      %p54 = pneg %p48
      %p55 = scmp.eq.s32.totalorder %s18, 1
      %p56 = por %p54, %p55
      %p57 = scmp.ne.s32.totalorder %s49, %s52
      %p58 = scmp.eq.s32.totalorder %s18, 0
      %p59 = por %p57, %p58
      %p60 = scmp.ne.s32.totalorder %s49, %s52
      %p61 = scmp.eq.s32.totalorder %s23, 1
      %p62 = por %p60, %p61
      %p63 = scmp.ne.s32.totalorder %s52, %s53
      %p64 = scmp.eq.s32.totalorder %s23, 0
      %p65 = por %p63, %p64
      %p66 = scmp.ne.s32.totalorder %s52, %s53
      %p67 = scmp.eq.s32.totalorder %s24, 1
      %p68 = por %p66, %p67
      %p70 = scmp.ne.s32.totalorder %s53, %s69
      %p71 = scmp.eq.s32.totalorder %s24, 0
      %p72 = por %p70, %p71
      %s73 = ssub.s32 %s25, %s44
      %s74 = ssub.s32 %s27, %s36
      %s75 = sor.u32 %s73, %s74
      %p76 = scmp.eq.s32.totalorder %s75, 0
      %s78 = sadd.s32 %s77, 1
      %s79 = scalar_select %p76, %s77, %s78
      %p82 = pneg %p76
      %p83 = scmp.eq.s32.totalorder %s18, 1
      %p84 = por %p82, %p83
      %p85 = scmp.ne.s32.totalorder %s77, %s80
      %p86 = scmp.eq.s32.totalorder %s18, 0
      %p87 = por %p85, %p86
      %p88 = scmp.ne.s32.totalorder %s77, %s80
      %p89 = scmp.eq.s32.totalorder %s23, 1
      %p90 = por %p88, %p89
      %p91 = scmp.ne.s32.totalorder %s80, %s81
      %p92 = scmp.eq.s32.totalorder %s23, 0
      %p93 = por %p91, %p92
      %p94 = scmp.ne.s32.totalorder %s80, %s81
      %p95 = scmp.eq.s32.totalorder %s24, 1
      %p96 = por %p94, %p95
      %p98 = scmp.ne.s32.totalorder %s81, %s97
      %p99 = scmp.eq.s32.totalorder %s24, 0
      %p100 = por %p98, %p99
      %s102 = sadd.s32 %s101, 1
      %p105 = scmp.eq.s32.totalorder %s18, 1
      %p106 = scmp.ne.s32.totalorder %s101, %s103
      %p107 = scmp.eq.s32.totalorder %s18, 0
      %p108 = por %p106, %p107
      %p109 = scmp.ne.s32.totalorder %s101, %s103
      %p110 = scmp.eq.s32.totalorder %s23, 1
      %p111 = por %p109, %p110
      %p112 = scmp.ne.s32.totalorder %s103, %s104
      %p113 = scmp.eq.s32.totalorder %s23, 0
      %p114 = por %p112, %p113
      %p115 = scmp.ne.s32.totalorder %s103, %s104
      %p116 = scmp.eq.s32.totalorder %s24, 1
      %p117 = por %p115, %p116
      %p119 = scmp.ne.s32.totalorder %s104, %s118
      %p120 = scmp.eq.s32.totalorder %s24, 0
      %p121 = por %p119, %p120
      %s122 = ssub.s32 %s25, %s44
      %s123 = ssub.s32 %s26, %s40
      %s124 = sor.u32 %s122, %s123
      %p125 = scmp.eq.s32.totalorder %s124, 0
      %s127 = sadd.s32 %s126, 1
      %s128 = scalar_select %p125, %s126, %s127
      %p131 = pneg %p125
      %p132 = scmp.eq.s32.totalorder %s18, 1
      %p133 = por %p131, %p132
      %p134 = scmp.ne.s32.totalorder %s126, %s129
      %p135 = scmp.eq.s32.totalorder %s18, 0
      %p136 = por %p134, %p135
      %p137 = scmp.ne.s32.totalorder %s126, %s129
      %p138 = scmp.eq.s32.totalorder %s23, 1
      %p139 = por %p137, %p138
      %p140 = scmp.ne.s32.totalorder %s129, %s130
      %p141 = scmp.eq.s32.totalorder %s23, 0
      %p142 = por %p140, %p141
      %p143 = scmp.ne.s32.totalorder %s129, %s130
      %p144 = scmp.eq.s32.totalorder %s24, 1
      %p145 = por %p143, %p144
      %p147 = scmp.ne.s32.totalorder %s130, %s146
      %p148 = scmp.eq.s32.totalorder %s24, 0
      %p149 = por %p147, %p148
      %p150 = scmp.le.s32.totalorder 1, %s18
      %p151 = scmp.lt.s32.totalorder %s18, 3
      %p152 = pnand %p150, %p151
      %p153 = pneg %p152
      // Predicated region
      $region9: #{tpu_custom_call.1} parent=5 // pred_check
        _
      $region10: #{tpu_custom_call.1} parent=5 // pred_check_branch
        %155 = sbr.rel (%p152) target = $region12
      $region11: #{tpu_custom_call.1} parent=5 // pred_region
        %s156 = ssub.s32 %s18, 1
        // Predicated region
        $region13: #{tpu_custom_call.1} parent=11 // pred_check
          %p157 = pneg %p114
        $region14: #{tpu_custom_call.1} parent=11 // pred_check_branch
          %159 = sbr.rel (%p157) target = $region16
        $region15: #{tpu_custom_call.1} parent=11 // pred_region
          %s161 = ssub.s32 1536, 1536
          %162 = vsyncadd [#allocation10], %s161
          %s163 = sshll.u32 [#allocation11], 4
          %s164 = int_to_ptr.vmem [resolvable:$true] %s163
          %169 = dma.hbm_to_vmem [thread:$0]  %s2, 1536, %s164, [#allocation10], 384, 384, 24
        $region16: #{tpu_custom_call.1} parent=11 // pred_fallthru
          _
      $region12: #{tpu_custom_call.1} parent=5 // pred_fallthru
        _
      %p170 = scmp.lt.s32.totalorder %s18, 2
      // Predicated region
      $region17: #{tpu_custom_call.1} parent=5 // pred_check
        %p171 = pneg %p170
      $region18: #{tpu_custom_call.1} parent=5 // pred_check_branch
        %173 = sbr.rel (%p171) target = $region20
      $region19: #{tpu_custom_call.1} parent=5 // pred_region
        // Predicated region
        $region21: #{tpu_custom_call.1} parent=19 // pred_check
          %p174 = pneg %p59
        $region22: #{tpu_custom_call.1} parent=19 // pred_check_branch
          %176 = sbr.rel (%p174) target = $region24
        $region23: #{tpu_custom_call.1} parent=19 // pred_region
          %s177 = sand.u32 %s49, 1
          %s178 = scalar_lea.sflag [#allocation7], %s177
          %s179 = sand.u32 %s49, 1
          %s180 = smul.addr %s179, 8
          %s181 = scalar_lea.vmem [#allocation6], %s180
          %s183 = ssub.s32 128, 128
          %184 = vsyncadd %s178, %s183
          %s185 = sadd.s32 %s26, %s25
          %s186 = smul.addr %s185, 128
          %s187 = scalar_lea.hbm %s0, %s186
          %s189 = sshll.u32 %s181, 4
          %s190 = int_to_ptr.vmem [resolvable:$true] %s189
          %192 = dma.hbm_to_vmem [thread:$0]  %s187, 128, %s190, %s178
        $region24: #{tpu_custom_call.1} parent=19 // pred_fallthru
          _
        // Predicated region
        $region25: #{tpu_custom_call.1} parent=19 // pred_check
          %p193 = pneg %p87
        $region26: #{tpu_custom_call.1} parent=19 // pred_check_branch
          %195 = sbr.rel (%p193) target = $region28
        $region27: #{tpu_custom_call.1} parent=19 // pred_region
          %s196 = sand.u32 %s18, 1
          %s197 = scalar_lea.sflag [#allocation10], %s196
          %s198 = sand.u32 %s77, 1
          %s199 = smul.addr %s198, 8
          %s200 = scalar_lea.vmem [#allocation9], %s199
          %s202 = ssub.s32 128, 128
          %203 = vsyncadd %s197, %s202
          %s204 = sadd.s32 %s27, %s25
          %s205 = smul.addr %s204, 128
          %s206 = scalar_lea.hbm %s1, %s205
          %s208 = sshll.u32 %s200, 4
          %s209 = int_to_ptr.vmem [resolvable:$true] %s208
          %211 = dma.hbm_to_vmem [thread:$0]  %s206, 128, %s209, %s197
        $region28: #{tpu_custom_call.1} parent=19 // pred_fallthru
          _
      $region20: #{tpu_custom_call.1} parent=5 // pred_fallthru
        _
      %p212 = scmp.le.s32.totalorder 1, %s18
      %p213 = scmp.lt.s32.totalorder %s18, 3
      %p214 = pnand %p212, %p213
      %p215 = pneg %p214
      // Predicated region
      $region29: #{tpu_custom_call.1} parent=5 // pred_check
        _
      $region30: #{tpu_custom_call.1} parent=5 // pred_check_branch
        %217 = sbr.rel (%p214) target = $region32
      $region31: #{tpu_custom_call.1} parent=5 // pred_region
        %s218 = ssub.s32 %s18, 1
        %s219 = sand.u32 %s52, 1
        %s220 = scalar_lea.sflag [#allocation7], %s219
        %s221 = sand.u32 %s52, 1
        %s222 = smul.addr %s221, 8
        %s223 = scalar_lea.vmem [#allocation6], %s222
        // Predicated region
        $region33: #{tpu_custom_call.1} parent=31 // pred_check
          %p224 = pneg %p65
        $region34: #{tpu_custom_call.1} parent=31 // pred_check_branch
          %226 = sbr.rel (%p224) target = $region36
        $region35: #{tpu_custom_call.1} parent=31 // pred_region
          %227 = dma.done %s220, 128
        $region36: #{tpu_custom_call.1} parent=31 // pred_fallthru
          _
        %s228 = sand.u32 %s23, 1
        %s229 = scalar_lea.sflag [#allocation10], %s228
        %s230 = sand.u32 %s80, 1
        %s231 = smul.addr %s230, 8
        %s232 = scalar_lea.vmem [#allocation9], %s231
        // Predicated region
        $region37: #{tpu_custom_call.1} parent=31 // pred_check
          %p233 = pneg %p93
        $region38: #{tpu_custom_call.1} parent=31 // pred_check_branch
          %235 = sbr.rel (%p233) target = $region40
        $region39: #{tpu_custom_call.1} parent=31 // pred_region
          %236 = dma.done %s229, 128
        $region40: #{tpu_custom_call.1} parent=31 // pred_fallthru
          _
        // Predicated region
        $region41: #{tpu_custom_call.1} parent=31 // pred_check
          %p237 = pneg %p114
        $region42: #{tpu_custom_call.1} parent=31 // pred_check_branch
          %239 = sbr.rel (%p237) target = $region44
        $region43: #{tpu_custom_call.1} parent=31 // pred_region
          %240 = dma.done [#allocation10], 1536
        $region44: #{tpu_custom_call.1} parent=31 // pred_fallthru
          _
        %s241 = sand.u32 %s52, 1
        %s242 = scalar_lea.sflag [#allocation7], %s241
        %s243 = sand.u32 %s52, 1
        %s244 = smul.addr %s243, 8
        %s245 = scalar_lea.vmem [#allocation6], %s244
        %p246 = pneg %p65
        %p247 = pneg %p62
        %s248 = sand.u32 %s23, 1
        %s249 = scalar_lea.sflag [#allocation10], %s248
        %s250 = sand.u32 %s80, 1
        %s251 = smul.addr %s250, 8
        %s252 = scalar_lea.vmem [#allocation9], %s251
        %p253 = pneg %p93
        %p254 = pneg %p90
        %p255 = pneg %p114
        %p256 = pneg %p111
        %p257 = pneg %p142
        %p258 = pneg %p139
        %s259 = sand.u32 %s129, 1
        %s260 = scalar_lea.sflag [#allocation8], %s259
        %s261 = sand.u32 %s129, 1
        %s262 = smul.addr %s261, 8
        %s263 = scalar_lea.vmem [#allocation12], %s262
        %s264 = smul.u32 %s29, 8
        %s265 = smul.u32 %s30, 8
        %p266 = scmp.eq.s32.totalorder %s30, 0
        // Predicated region
        $region45: #{tpu_custom_call.1} parent=31 // pred_check
          %p267 = pneg %p266
        $region46: #{tpu_custom_call.1} parent=31 // pred_check_branch
          %269 = sbr.rel (%p267) target = $region48
        $region47: #{tpu_custom_call.1} parent=31 // pred_region
          %v270 = vld [vmem:[%s223] sm:$0xff]
          %v271 = vld [vmem:[#allocation11] sm:$0xff]
          %v272 = vld [vmem:[#allocation11 + $0x18] sm:$0xff]
          %v273 = vld [vmem:[#allocation11 + $0x30] sm:$0xff]
          %v274 = vld [vmem:[#allocation11 + $0x48] sm:$0xff]
          %vm275 = vcmask 261120
          %v277 = vsel %vm275, %v270, 0
          %279 = vmatprep.subr.mxu0 0.0
          %280 = vmatpush1.msra.mxu0 0.0
          %281 = vmatprep.subr.mxu0 0.0
          %282 = vmatpush1.msra.mxu0 0.0
          %283 = vmatprep.subr.mxu0 0.0
          %284 = vmatpush1.msra.mxu0 0.0
          %285 = vmatprep.subr.mxu0 0.0
          %286 = vmatpush1.msra.mxu0 0.0
          %287 = vmatprep.subr.mxu0 0.0
          %288 = vmatpush1.msra.mxu0 0.0
          %289 = vmatprep.subr.mxu0 0.0
          %290 = vmatpush1.msra.mxu0 0.0
          %291 = vmatprep.subr.mxu0 0.0
          %292 = vmatpush1.msra.mxu0 0.0
          %293 = vmatprep.subr.mxu0 0.0
          %294 = vmatpush1.msra.mxu0 0.0
          %295 = vmatprep.subr.mxu0 0.0
          %296 = vmatpush1.msra.mxu0 0.0
          %297 = vmatprep.subr.mxu0 0.0
          %298 = vmatpush1.msra.mxu0 0.0
          %299 = vmatprep.subr.mxu0 0.0
          %300 = vmatpush1.msra.mxu0 0.0
          %301 = vmatprep.subr.mxu0 0.0
          %302 = vmatpush1.msra.mxu0 0.0
          %303 = vmatprep.subr.mxu0 0.0
          %304 = vmatpush1.msra.mxu0 %v274
          %305 = vmatprep.subr.mxu0 0.0
          %306 = vmatpush1.msra.mxu0 %v273
          %307 = vmatprep.subr.mxu0 0.0
          %308 = vmatpush1.msra.mxu0 %v272
          %309 = vmatprep.subr.mxu0 0.0
          %310 = vmatpush1.msra.mxu0 %v271
          %311 = vmatprep.subr.mxu0 0.0
          %312 = vmatpush2.msra.mxu0 0.0
          %313 = vmatprep.subr.mxu0 0.0
          %314 = vmatpush2.msra.mxu0 0.0
          %315 = vmatprep.subr.mxu0 0.0
          %316 = vmatpush2.msra.mxu0 0.0
          %317 = vmatprep.subr.mxu0 0.0
          %318 = vmatpush2.msra.mxu0 0.0
          %319 = vmatprep.subr.mxu0 0.0
          %320 = vmatpush2.msra.mxu0 0.0
          %321 = vmatprep.subr.mxu0 0.0
          %322 = vmatpush2.msra.mxu0 0.0
          %323 = vmatprep.subr.mxu0 0.0
          %324 = vmatpush2.msra.mxu0 0.0
          %325 = vmatprep.subr.mxu0 0.0
          %326 = vmatpush2.msra.mxu0 0.0
          %327 = vmatprep.subr.mxu0 0.0
          %328 = vmatpush2.msra.mxu0 0.0
          %329 = vmatprep.subr.mxu0 0.0
          %330 = vmatpush2.msra.mxu0 0.0
          %331 = vmatprep.subr.mxu0 0.0
          %332 = vmatpush2.msra.mxu0 0.0
          %333 = vmatprep.subr.mxu0 0.0
          %334 = vmatpush2.msra.mxu0 0.0
          %335 = vmatprep.subr.mxu0 0.0
          %336 = vmatpush2.msra.mxu0 0.0
          %337 = vmatprep.subr.mxu0 0.0
          %338 = vmatpush2.msra.mxu0 0.0
          %339 = vmatprep.subr.mxu0 0.0
          %340 = vmatpush2.msra.mxu0 0.0
          %341 = vmatprep.subr.mxu0 0.0
          %342 = vmatpush2.msra.mxu0 0.0
          %343 = vmatprep.mubr.f32.mxu0 0.0
          %344 = vmatmul.mubr.f32.gmra.mxu0 %v277
          %v345 = vpop.f32.mrf.mxu0
          %v346 = vadd.f32 0.0, %v345
          %v347 = vpop.f32.mrf.mxu0
          %348 = vdwg.mxu0
          %349 = vst [vmem:[#allocation2] sm:$0xff] %v346
          %vm350 = vcmask 7168
          %351 = vst.msk [vmem:[#allocation3] sm:$0xff] %vm350, -1e+30
          %352 = vst.msk [vmem:[#allocation4] sm:$0xff] %vm350, 0.0
          %353 = vst [vmem:[#allocation5] sm:$0xff] 0.0
        $region48: #{tpu_custom_call.1} parent=31 // pred_fallthru
          _
        %s354 = sadd.s32 %s264, 7
        %p355 = scmp.le.s32.totalorder %s265, %s354
        // Predicated region
        $region49: #{tpu_custom_call.1} parent=31 // pred_check
          %p356 = pneg %p355
        $region50: #{tpu_custom_call.1} parent=31 // pred_check_branch
          %358 = sbr.rel (%p356) target = $region52
        $region51: #{tpu_custom_call.1} parent=31 // pred_region
          %v359 = vld [vmem:[%s232] sm:$0xff]
          %v360 = vld [vmem:[#allocation11 + $0x8] sm:$0xff]
          %v361 = vld [vmem:[#allocation11 + $0x10] sm:$0xff]
          %v362 = vld [vmem:[#allocation11 + $0x20] sm:$0xff]
          %v363 = vld [vmem:[#allocation11 + $0x28] sm:$0xff]
          %v364 = vld [vmem:[#allocation11 + $0x38] sm:$0xff]
          %v365 = vld [vmem:[#allocation11 + $0x40] sm:$0xff]
          %v366 = vld [vmem:[#allocation11 + $0x50] sm:$0xff]
          %v367 = vld [vmem:[#allocation11 + $0x58] sm:$0xff]
          %vm368 = vcmask 261120
          %v370 = vsel %vm368, %v359, 0
          %372 = vmatprep.subr.mxu0 0.0
          %373 = vmatpush1.msra.mxu0 0.0
          %374 = vmatprep.subr.mxu0 0.0
          %375 = vmatpush1.msra.mxu0 0.0
          %376 = vmatprep.subr.mxu0 0.0
          %377 = vmatpush1.msra.mxu0 0.0
          %378 = vmatprep.subr.mxu0 0.0
          %379 = vmatpush1.msra.mxu0 0.0
          %380 = vmatprep.subr.mxu0 0.0
          %381 = vmatpush1.msra.mxu0 0.0
          %382 = vmatprep.subr.mxu0 0.0
          %383 = vmatpush1.msra.mxu0 0.0
          %384 = vmatprep.subr.mxu0 0.0
          %385 = vmatpush1.msra.mxu0 0.0
          %386 = vmatprep.subr.mxu0 0.0
          %387 = vmatpush1.msra.mxu0 0.0
          %388 = vmatprep.subr.mxu0 0.0
          %389 = vmatpush1.msra.mxu0 0.0
          %390 = vmatprep.subr.mxu0 0.0
          %391 = vmatpush1.msra.mxu0 0.0
          %392 = vmatprep.subr.mxu0 0.0
          %393 = vmatpush1.msra.mxu0 0.0
          %394 = vmatprep.subr.mxu0 0.0
          %395 = vmatpush1.msra.mxu0 0.0
          %396 = vmatprep.subr.mxu0 %v367
          %397 = vmatpush1.msra.mxu0 %v366
          %398 = vmatprep.subr.mxu0 %v365
          %399 = vmatpush1.msra.mxu0 %v364
          %400 = vmatprep.subr.mxu0 %v363
          %401 = vmatpush1.msra.mxu0 %v362
          %402 = vmatprep.subr.mxu0 %v361
          %403 = vmatpush1.msra.mxu0 %v360
          %404 = vmatprep.subr.mxu0 0.0
          %405 = vmatpush2.msra.mxu0 0.0
          %406 = vmatprep.subr.mxu0 0.0
          %407 = vmatpush2.msra.mxu0 0.0
          %408 = vmatprep.subr.mxu0 0.0
          %409 = vmatpush2.msra.mxu0 0.0
          %410 = vmatprep.subr.mxu0 0.0
          %411 = vmatpush2.msra.mxu0 0.0
          %412 = vmatprep.subr.mxu0 0.0
          %413 = vmatpush2.msra.mxu0 0.0
          %414 = vmatprep.subr.mxu0 0.0
          %415 = vmatpush2.msra.mxu0 0.0
          %416 = vmatprep.subr.mxu0 0.0
          %417 = vmatpush2.msra.mxu0 0.0
          %418 = vmatprep.subr.mxu0 0.0
          %419 = vmatpush2.msra.mxu0 0.0
          %420 = vmatprep.subr.mxu0 0.0
          %421 = vmatpush2.msra.mxu0 0.0
          %422 = vmatprep.subr.mxu0 0.0
          %423 = vmatpush2.msra.mxu0 0.0
          %424 = vmatprep.subr.mxu0 0.0
          %425 = vmatpush2.msra.mxu0 0.0
          %426 = vmatprep.subr.mxu0 0.0
          %427 = vmatpush2.msra.mxu0 0.0
          %428 = vmatprep.subr.mxu0 0.0
          %429 = vmatpush2.msra.mxu0 0.0
          %430 = vmatprep.subr.mxu0 0.0
          %431 = vmatpush2.msra.mxu0 0.0
          %432 = vmatprep.subr.mxu0 0.0
          %433 = vmatpush2.msra.mxu0 0.0
          %434 = vmatprep.subr.mxu0 0.0
          %435 = vmatpush2.msra.mxu0 0.0
          %436 = vmatprep.mubr.f32.mxu0 0.0
          %437 = vmatmul.mubr.f32.gmra.mxu0 %v370
          %v438 = vpop.f32.mrf.mxu0
          %v439 = vadd.f32 0.0, %v438
          %v440 = vpop.f32.mrf.mxu0
          %v441 = vadd.f32 0.0, %v440
          %442 = vdwg.mxu0
          %v443 = vld [vmem:[#allocation2] sm:$0xff]
          %444 = vmatprep.subr.mxu0 0.0
          %445 = vmatpush1.xpose.msra.mxu0 0.0
          %446 = vmatprep.subr.mxu0 0.0
          %447 = vmatpush1.xpose.msra.mxu0 0.0
          %448 = vmatprep.subr.mxu0 0.0
          %449 = vmatpush1.xpose.msra.mxu0 0.0
          %450 = vmatprep.subr.mxu0 0.0
          %451 = vmatpush1.xpose.msra.mxu0 0.0
          %452 = vmatprep.subr.mxu0 0.0
          %453 = vmatpush1.xpose.msra.mxu0 0.0
          %454 = vmatprep.subr.mxu0 0.0
          %455 = vmatpush1.xpose.msra.mxu0 0.0
          %456 = vmatprep.subr.mxu0 0.0
          %457 = vmatpush1.xpose.msra.mxu0 0.0
          %458 = vmatprep.subr.mxu0 0.0
          %459 = vmatpush1.xpose.msra.mxu0 0.0
          %460 = vmatprep.subr.mxu0 0.0
          %461 = vmatpush1.xpose.msra.mxu0 0.0
          %462 = vmatprep.subr.mxu0 0.0
          %463 = vmatpush1.xpose.msra.mxu0 0.0
          %464 = vmatprep.subr.mxu0 0.0
          %465 = vmatpush1.xpose.msra.mxu0 0.0
          %466 = vmatprep.subr.mxu0 0.0
          %467 = vmatpush1.xpose.msra.mxu0 0.0
          %468 = vmatprep.subr.mxu0 0.0
          %469 = vmatpush1.xpose.msra.mxu0 0.0
          %470 = vmatprep.subr.mxu0 0.0
          %471 = vmatpush1.xpose.msra.mxu0 0.0
          %472 = vmatprep.subr.mxu0 0.0
          %473 = vmatpush1.xpose.msra.mxu0 0.0
          %474 = vmatprep.subr.mxu0 0.0
          %475 = vmatpush1.xpose.msra.mxu0 %v439
          %476 = vmatprep.subr.mxu0 0.0
          %477 = vmatpush2.xpose.msra.mxu0 0.0
          %478 = vmatprep.subr.mxu0 0.0
          %479 = vmatpush2.xpose.msra.mxu0 0.0
          %480 = vmatprep.subr.mxu0 0.0
          %481 = vmatpush2.xpose.msra.mxu0 0.0
          %482 = vmatprep.subr.mxu0 0.0
          %483 = vmatpush2.xpose.msra.mxu0 0.0
          %484 = vmatprep.subr.mxu0 0.0
          %485 = vmatpush2.xpose.msra.mxu0 0.0
          %486 = vmatprep.subr.mxu0 0.0
          %487 = vmatpush2.xpose.msra.mxu0 0.0
          %488 = vmatprep.subr.mxu0 0.0
          %489 = vmatpush2.xpose.msra.mxu0 0.0
          %490 = vmatprep.subr.mxu0 0.0
          %491 = vmatpush2.xpose.msra.mxu0 0.0
          %492 = vmatprep.subr.mxu0 0.0
          %493 = vmatpush2.xpose.msra.mxu0 0.0
          %494 = vmatprep.subr.mxu0 0.0
          %495 = vmatpush2.xpose.msra.mxu0 0.0
          %496 = vmatprep.subr.mxu0 0.0
          %497 = vmatpush2.xpose.msra.mxu0 0.0
          %498 = vmatprep.subr.mxu0 0.0
          %499 = vmatpush2.xpose.msra.mxu0 0.0
          %500 = vmatprep.subr.mxu0 0.0
          %501 = vmatpush2.xpose.msra.mxu0 0.0
          %502 = vmatprep.subr.mxu0 0.0
          %503 = vmatpush2.xpose.msra.mxu0 0.0
          %504 = vmatprep.subr.mxu0 0.0
          %505 = vmatpush2.xpose.msra.mxu0 0.0
          %506 = vmatprep.subr.mxu0 0.0
          %507 = vmatpush2.xpose.msra.mxu0 0.0
          %508 = vmatprep.mubr.f32.mxu0 0.0
          %509 = vmatmul.mubr.f32.gmra.mxu0 %v443
          %v510 = vpop.f32.mrf.mxu0
          %v511 = vadd.f32 0.0, %v510
          %v512 = vpop.f32.mrf.mxu0
          %513 = vdwg.mxu0
          %v514 = vlaneseq
          %v515 = vshrl.u32 %v514, 7
          %v516 = vstv %s264
          %v517 = vadd.s32 %v516, %v515
          %v518 = vlaneseq
          %v519 = vand.u32 %v518, 127
          %v520 = vstv %s265
          %v521 = vadd.s32 %v520, %v519
          %vm522 = vcmp.ge.s32.totalorder %v517, %v521
          %v523 = vsel %vm522, %v511, -1e+30
          %v524 = vld [vmem:[#allocation3] sm:$0xff]
          %vm525 = vcmask 64512
          %v526 = vsel %vm525, %v523, -inf
          %527 = vmax.xlane.f32.xlu0 %v526
          %v528 = vpop.xlane.xlu0 %527
          %v529 = vmax.f32 %v524, %v528
          %v530 = vsub.f32 %v524, %v529
          %v531 = vmul.f32 %v530, 1.442695
          %v532 = vpow.pop %v531
          %534 = vset.pattern.permute.xlu0 0
          %535 = vperm.xlu0 %534, %v529
          %v536 = vpop.permute.xlu0 %535
          %v538 = vsub.f32 %v523, %v536
          %v539 = vmul.f32 %v538, 1.442695
          %v540 = vpow.pop %v539
          %v541 = vld [vmem:[#allocation4] sm:$0xff]
          %v542 = vmul.f32 %v532, %v541
          %v543 = vsel %vm525, %v540, 0.0
          %544 = vadd.xlane.f32.xlu0 %v543
          %v545 = vpop.xlane.xlu0 %544
          %v546 = vadd.f32 %v542, %v545
          %vm547 = vcmask 7168
          %548 = vst.msk [vmem:[#allocation4] sm:$0xff] %vm547, %v546
          %v549 = vld [vmem:[#allocation5] sm:$0xff]
          %551 = vset.pattern.permute.xlu0 0
          %552 = vperm.xlu0 %551, %v532
          %v553 = vpop.permute.xlu0 %552
          %v555 = vmul.f32 %v553, %v549
          %v557 = vsel %vm525, %v540, 0
          %559 = vmatprep.subr.mxu0 0.0
          %560 = vmatpush1.msra.mxu0 0.0
          %561 = vmatprep.subr.mxu0 0.0
          %562 = vmatpush1.msra.mxu0 0.0
          %563 = vmatprep.subr.mxu0 0.0
          %564 = vmatpush1.msra.mxu0 0.0
          %565 = vmatprep.subr.mxu0 0.0
          %566 = vmatpush1.msra.mxu0 0.0
          %567 = vmatprep.subr.mxu0 0.0
          %568 = vmatpush1.msra.mxu0 0.0
          %569 = vmatprep.subr.mxu0 0.0
          %570 = vmatpush1.msra.mxu0 0.0
          %571 = vmatprep.subr.mxu0 0.0
          %572 = vmatpush1.msra.mxu0 0.0
          %573 = vmatprep.subr.mxu0 0.0
          %574 = vmatpush1.msra.mxu0 0.0
          %575 = vmatprep.subr.mxu0 0.0
          %576 = vmatpush1.msra.mxu0 0.0
          %577 = vmatprep.subr.mxu0 0.0
          %578 = vmatpush1.msra.mxu0 0.0
          %579 = vmatprep.subr.mxu0 0.0
          %580 = vmatpush1.msra.mxu0 0.0
          %581 = vmatprep.subr.mxu0 0.0
          %582 = vmatpush1.msra.mxu0 0.0
          %583 = vmatprep.subr.mxu0 0.0
          %584 = vmatpush1.msra.mxu0 0.0
          %585 = vmatprep.subr.mxu0 0.0
          %586 = vmatpush1.msra.mxu0 0.0
          %587 = vmatprep.subr.mxu0 0.0
          %588 = vmatpush1.msra.mxu0 0.0
          %589 = vmatprep.subr.mxu0 0.0
          %590 = vmatpush1.msra.mxu0 %v441
          %591 = vmatprep.subr.mxu0 0.0
          %592 = vmatpush2.msra.mxu0 0.0
          %593 = vmatprep.subr.mxu0 0.0
          %594 = vmatpush2.msra.mxu0 0.0
          %595 = vmatprep.subr.mxu0 0.0
          %596 = vmatpush2.msra.mxu0 0.0
          %597 = vmatprep.subr.mxu0 0.0
          %598 = vmatpush2.msra.mxu0 0.0
          %599 = vmatprep.subr.mxu0 0.0
          %600 = vmatpush2.msra.mxu0 0.0
          %601 = vmatprep.subr.mxu0 0.0
          %602 = vmatpush2.msra.mxu0 0.0
          %603 = vmatprep.subr.mxu0 0.0
          %604 = vmatpush2.msra.mxu0 0.0
          %605 = vmatprep.subr.mxu0 0.0
          %606 = vmatpush2.msra.mxu0 0.0
          %607 = vmatprep.subr.mxu0 0.0
          %608 = vmatpush2.msra.mxu0 0.0
          %609 = vmatprep.subr.mxu0 0.0
          %610 = vmatpush2.msra.mxu0 0.0
          %611 = vmatprep.subr.mxu0 0.0
          %612 = vmatpush2.msra.mxu0 0.0
          %613 = vmatprep.subr.mxu0 0.0
          %614 = vmatpush2.msra.mxu0 0.0
          %615 = vmatprep.subr.mxu0 0.0
          %616 = vmatpush2.msra.mxu0 0.0
          %617 = vmatprep.subr.mxu0 0.0
          %618 = vmatpush2.msra.mxu0 0.0
          %619 = vmatprep.subr.mxu0 0.0
          %620 = vmatpush2.msra.mxu0 0.0
          %621 = vmatprep.subr.mxu0 0.0
          %622 = vmatpush2.msra.mxu0 0.0
          %623 = vmatprep.mubr.f32.mxu0 0.0
          %624 = vmatmul.mubr.f32.gmra.mxu0 %v557
          %v625 = vpop.f32.mrf.mxu0
          %v626 = vadd.f32 0.0, %v625
          %v627 = vpop.f32.mrf.mxu0
          %628 = vdwg.mxu0
          %v629 = vadd.f32 %v555, %v626
          %630 = vst [vmem:[#allocation5] sm:$0xff] %v629
          %631 = vst.msk [vmem:[#allocation3] sm:$0xff] %vm547, %v529
        $region52: #{tpu_custom_call.1} parent=31 // pred_fallthru
          _
        // Predicated region
        $region53: #{tpu_custom_call.1} parent=31 // pred_check
          %p632 = pneg %p266
        $region54: #{tpu_custom_call.1} parent=31 // pred_check_branch
          %634 = sbr.rel (%p632) target = $region56
        $region55: #{tpu_custom_call.1} parent=31 // pred_region
          %v635 = vld [vmem:[#allocation4] sm:$0xff]
          %v636 = vrcp.pop %v635
          %v637 = vld [vmem:[#allocation5] sm:$0xff]
          %639 = vset.pattern.permute.xlu0 0
          %640 = vperm.xlu0 %639, %v636
          %v641 = vpop.permute.xlu0 %640
          %v643 = vmul.f32 %v637, %v641
          %644 = vst [vmem:[%s263] sm:$0xff] %v643
        $region56: #{tpu_custom_call.1} parent=31 // pred_fallthru
          _
        %s645 = sand.u32 %s129, 1
        %s646 = scalar_lea.sflag [#allocation8], %s645
        %s647 = sand.u32 %s129, 1
        %s648 = smul.addr %s647, 8
        %s649 = scalar_lea.vmem [#allocation12], %s648
        // Predicated region
        $region57: #{tpu_custom_call.1} parent=31 // pred_check
          %p650 = pneg %p139
        $region58: #{tpu_custom_call.1} parent=31 // pred_check_branch
          %652 = sbr.rel (%p650) target = $region60
        $region59: #{tpu_custom_call.1} parent=31 // pred_region
          %s654 = ssub.s32 128, 128
          %655 = vsyncadd %s646, %s654
          %s656 = sadd.s32 %s29, %s28
          %s657 = smul.addr %s656, 128
          %s658 = scalar_lea.hbm %s3, %s657
          %s660 = sshll.u32 %s649, 4
          %s661 = int_to_ptr.vmem [resolvable:$true] %s660
          %663 = dma.vmem_to_hbm [thread:$0]  %s661, 128, %s658, %s646
        $region60: #{tpu_custom_call.1} parent=31 // pred_fallthru
          _
      $region32: #{tpu_custom_call.1} parent=5 // pred_fallthru
        _
      %p664 = scmp.le.s32.totalorder 2, %s18
      // Predicated region
      $region61: #{tpu_custom_call.1} parent=5 // pred_check
        %p665 = pneg %p664
      $region62: #{tpu_custom_call.1} parent=5 // pred_check_branch
        %667 = sbr.rel (%p665) target = $region64
      $region63: #{tpu_custom_call.1} parent=5 // pred_region
        %s668 = ssub.s32 %s18, 2
        // Predicated region
        $region65: #{tpu_custom_call.1} parent=63 // pred_check
          %p669 = pneg %p145
        $region66: #{tpu_custom_call.1} parent=63 // pred_check_branch
          %671 = sbr.rel (%p669) target = $region68
        $region67: #{tpu_custom_call.1} parent=63 // pred_region
          %s672 = sand.u32 %s130, 1
          %s673 = scalar_lea.sflag [#allocation8], %s672
          %s674 = sand.u32 %s130, 1
          %s675 = smul.addr %s674, 8
          %s676 = scalar_lea.vmem [#allocation12], %s675
          %677 = dma.done %s673, 128
        $region68: #{tpu_custom_call.1} parent=63 // pred_fallthru
          _
      $region64: #{tpu_custom_call.1} parent=5 // pred_fallthru
        _
    $region6: #{tpu_custom_call.1} parent=1 // loop_footer
      %s22 = sadd.s32 1, %s18
    $region7: #{tpu_custom_call.1} parent=1 // loop_footer_branch
      %17 = sbr.rel target = $region3
    $region8: #{tpu_custom_call.1} parent=1 // loop_exit
      _
    %678 = vsyncpa [#allocation7], 1
    %s679 = scalar_lea.sflag [#allocation7], 1
    %680 = vsyncpa %s679, 1
    %681 = vsyncpa [#allocation10], 1
    %s682 = scalar_lea.sflag [#allocation10], 1
    %683 = vsyncpa %s682, 1
    %684 = vsyncpa [#allocation8], 1
    %s685 = scalar_lea.sflag [#allocation8], 1
    %686 = vsyncpa %s685, 1

</llo_original>
